<compile_context>
chip_gen: v5e
topology: v5e:2x2
jax: 0.10.0
libtpu: 0.0.40
codegen_flags: <defaults>
</compile_context>

<pallas_src>
import jax
import jax.numpy as jnp
from jax.experimental import pallas as pl
from jax.experimental.pallas import tpu as pltpu


def _round_up(n, m):
    return ((n + m - 1) // m) * m


_MAX_TB = 8192                      # hard cap on the batch tile (VMEM safety)
_VMEM_LIMIT = 32 * 1024 * 1024      # explicit scoped-VMEM limit (fits all chips)


def _choose_tile(batch, block_b):
    """Pick the batch-tile (sublane) size for the 1-D 'parallel' grid."""
    tb = max(128, (int(block_b) // 128) * 128)
    tb = min(tb, _MAX_TB)
    tb = min(tb, _round_up(batch, 128))
    # v7x has 2 TensorCores: a single-step "parallel" grid leaves one idle.
    if pl.cdiv(batch, tb) < 2 and batch > 256:
        tb = _round_up(pl.cdiv(batch, 2), 128)
    # Never larger than the (8-aligned) batch: avoids block > array corner
    # cases and keeps the second-minor block dim a multiple of 8.
    tb = min(tb, _round_up(batch, 8))
    return max(tb, 8)


def _mlp_kernel(x_ref, w1_ref, b1_ref, w2_ref, b2_ref, o_ref):
    # x_ref : (tb, in)   streaming batch tile (natural row-major layout)
    # w1_ref: (in, hid), b1_ref: (1, hid)   -- VMEM resident
    # w2_ref: (hid, out), b2_ref: (1, out)  -- VMEM resident
    # o_ref : (tb, out)
    h = jnp.dot(x_ref[...], w1_ref[...], preferred_element_type=jnp.float32)
    h = jnp.maximum(h + b1_ref[...], 0.0)            # bias + ReLU on the VPU
    y = jnp.dot(h, w2_ref[...], preferred_element_type=jnp.float32)
    o_ref[...] = (y + b2_ref[...]).astype(o_ref.dtype)


def net_forward(x, w1, b1, w2, b2, *, block_b=8192, min_pallas_batch=1024):
    """Forward pass of the DQN Net: relu(x @ w1 + b1) @ w2 + b2.

    x: (B, 4) f32; w1: (4, 50); b1: (1, 50) or (50,); w2: (50, 2); b2: (1, 2) or (2,).
    Returns (B, 2) f32, identical math to the PyTorch module.
    """
    batch = x.shape[0]
    in_dim, hid = w1.shape
    out_dim = w2.shape[1]

    x = jnp.asarray(x, jnp.float32)
    w1 = jnp.asarray(w1, jnp.float32)
    b1 = jnp.asarray(b1, jnp.float32).reshape(1, hid)
    w2 = jnp.asarray(w2, jnp.float32)
    b2 = jnp.asarray(b2, jnp.float32).reshape(1, out_dim)

    # Small-batch fast path (typical DQN batches): launch + pipeline overhead
    # cannot be amortized, and XLA fuses the whole 4->50->2 MLP into one op.
    if batch < min_pallas_batch:
        return jnp.maximum(x @ w1 + b1, 0.0) @ w2 + b2

    tb = _choose_tile(batch, block_b)
    grid = (pl.cdiv(batch, tb),)

    return pl.pallas_call(
        _mlp_kernel,
        out_shape=jax.ShapeDtypeStruct((batch, out_dim), jnp.float32),
        grid_spec=pltpu.PrefetchScalarGridSpec(
            num_scalar_prefetch=0,
            grid=grid,
            in_specs=[
                # streaming operand: one batch tile per grid step
                pl.BlockSpec((tb, in_dim), lambda i: (i, 0)),
                # weights / biases: constant index_map -> stay resident in VMEM
                pl.BlockSpec((in_dim, hid), lambda i: (0, 0)),
                pl.BlockSpec((1, hid), lambda i: (0, 0)),
                pl.BlockSpec((hid, out_dim), lambda i: (0, 0)),
                pl.BlockSpec((1, out_dim), lambda i: (0, 0)),
            ],
            out_specs=pl.BlockSpec((tb, out_dim), lambda i: (i, 0)),
        ),
        compiler_params=pltpu.CompilerParams(
            dimension_semantics=("parallel",),
            vmem_limit_bytes=_VMEM_LIMIT,
        ),
    )(x, w1, b1, w2, b2)


def init_params(key):
    """Deterministic init mimicking PyTorch nn.Linear default U(+/- 1/sqrt(fan_in))."""
    k1, k2, k3, k4 = jax.random.split(key, 4)
    in1, hid, out = 4, 50, 2
    lim1 = 1.0 / jnp.sqrt(in1)
    lim2 = 1.0 / jnp.sqrt(hid)
    # Stored transposed relative to PyTorch (out,in) -> here (in,out) for x @ W.
    w1 = jax.random.uniform(k1, (in1, hid), jnp.float32, -lim1, lim1)
    b1 = jax.random.uniform(k2, (1, hid), jnp.float32, -lim1, lim1)
    w2 = jax.random.uniform(k3, (hid, out), jnp.float32, -lim2, lim2)
    b2 = jax.random.uniform(k4, (1, out), jnp.float32, -lim2, lim2)
    return w1, b1, w2, b2


def _ref(x, w1, b1, w2, b2):
    return jnp.maximum(x @ w1 + b1, 0.0) @ w2 + b2


if __name__ == "__main__":
    key = jax.random.PRNGKey(0)
    kx, kp, kx2 = jax.random.split(key, 3)
    w1, b1, w2, b2 = init_params(kp)

    # DQN-sized batch: exercises the small-batch XLA fast path.
    B = 8
    x = jax.random.normal(kx, (B, 4), jnp.float32)
    ref = _ref(x, w1, b1, w2, b2)
    out_fast = jax.block_until_ready(net_forward(x, w1, b1, w2, b2))
    assert out_fast.shape == (B, 2)
    assert jnp.allclose(out_fast, ref, atol=1e-5, rtol=1e-5)

    # Same small batch, Pallas path forced: single exact-fit block, grid=(1,).
    out_k = jax.block_until_ready(
        net_forward(x, w1, b1, w2, b2, min_pallas_batch=0))
    assert out_k.shape == (B, 2)
    assert jnp.allclose(out_k, ref, atol=1e-5, rtol=1e-5)

    # Ragged batch with a small tile: multi-step "parallel" grid (grid=(3,))
    # with a Pallas-padded tail block (masked writes).
    B2 = 300
    x2 = jax.random.normal(kx2, (B2, 4), jnp.float32)
    out2 = jax.block_until_ready(
        net_forward(x2, w1, b1, w2, b2, block_b=128, min_pallas_batch=0))
    ref2 = _ref(x2, w1, b1, w2, b2)
    assert out2.shape == (B2, 2)
    assert jnp.allclose(out2, ref2, atol=1e-5, rtol=1e-5)

    print("KERNEL_OK")
</pallas_src>

<mosaic_0001>
module attributes {stable_mosaic.version = 11 : i64} {
  func.func @_mlp_kernel(%arg0: i32, %arg1: memref<8x4xf32, #tpu.memory_space<vmem>>, %arg2: memref<4x50xf32, #tpu.memory_space<vmem>>, %arg3: memref<1x50xf32, #tpu.memory_space<vmem>>, %arg4: memref<50x2xf32, #tpu.memory_space<vmem>>, %arg5: memref<1x2xf32, #tpu.memory_space<vmem>>, %arg6: memref<8x2xf32, #tpu.memory_space<vmem>>) attributes {dimension_semantics = [#tpu.dimension_semantics<parallel>], iteration_bounds = array<i64: 1>, scalar_prefetch = 0 : i64, scratch_operands = 0 : i64, tpu.core_type = #tpu.core_type<tc>, window_params = [{transform_indices = @transform_0, window_bounds = array<i64: 8, 4>}, {pipeline_mode = #tpu.pipeline_mode<synchronous>, transform_indices = @transform_1, window_bounds = array<i64: 4, 50>}, {pipeline_mode = #tpu.pipeline_mode<synchronous>, transform_indices = @transform_2, window_bounds = array<i64: 1, 50>}, {pipeline_mode = #tpu.pipeline_mode<synchronous>, transform_indices = @transform_3, window_bounds = array<i64: 50, 2>}, {pipeline_mode = #tpu.pipeline_mode<synchronous>, transform_indices = @transform_4, window_bounds = array<i64: 1, 2>}, {transform_indices = @transform_5, window_bounds = array<i64: 8, 2>}]} {
    %c0 = arith.constant 0 : index
    %c0_0 = arith.constant 0 : index
    %0 = vector.load %arg1[%c0, %c0_0] : memref<8x4xf32, #tpu.memory_space<vmem>>, vector<8x4xf32>
    %c0_1 = arith.constant 0 : index
    %c0_2 = arith.constant 0 : index
    %1 = vector.load %arg2[%c0_1, %c0_2] : memref<4x50xf32, #tpu.memory_space<vmem>>, vector<4x50xf32>
    %cst = arith.constant dense<0.000000e+00> : vector<8x50xf32>
    %2 = tpu.matmul %0, %1, %cst {dimension_numbers = #tpu.dot_dimension_numbers<[1], [0], [0], [1], [0, 0, 1, 1], [], []>} : vector<8x4xf32>, vector<4x50xf32>, vector<8x50xf32> -> vector<8x50xf32>
    %c0_3 = arith.constant 0 : index
    %c0_4 = arith.constant 0 : index
    %3 = vector.load %arg3[%c0_3, %c0_4] : memref<1x50xf32, #tpu.memory_space<vmem>>, vector<1x50xf32>
    %4 = vector.broadcast %3 : vector<1x50xf32> to vector<8x50xf32>
    %5 = arith.addf %2, %4 : vector<8x50xf32>
    %cst_5 = arith.constant 0.000000e+00 : f32
    %6 = vector.broadcast %cst_5 : f32 to vector<8x50xf32>
    %7 = arith.maximumf %5, %6 : vector<8x50xf32>
    %c0_6 = arith.constant 0 : index
    %c0_7 = arith.constant 0 : index
    %8 = vector.load %arg4[%c0_6, %c0_7] : memref<50x2xf32, #tpu.memory_space<vmem>>, vector<50x2xf32>
    %cst_8 = arith.constant dense<0.000000e+00> : vector<8x2xf32>
    %9 = tpu.matmul %7, %8, %cst_8 {dimension_numbers = #tpu.dot_dimension_numbers<[1], [0], [0], [1], [0, 0, 1, 1], [], []>} : vector<8x50xf32>, vector<50x2xf32>, vector<8x2xf32> -> vector<8x2xf32>
    %c0_9 = arith.constant 0 : index
    %c0_10 = arith.constant 0 : index
    %10 = vector.load %arg5[%c0_9, %c0_10] : memref<1x2xf32, #tpu.memory_space<vmem>>, vector<1x2xf32>
    %11 = vector.broadcast %10 : vector<1x2xf32> to vector<8x2xf32>
    %12 = arith.addf %9, %11 : vector<8x2xf32>
    %c0_11 = arith.constant 0 : index
    %c0_12 = arith.constant 0 : index
    %13 = vector.load %arg6[%c0_11, %c0_12] : memref<8x2xf32, #tpu.memory_space<vmem>>, vector<8x2xf32>
    tpu.vector_store %arg6[%c0_11, %c0_12], %12 {strides = array<i32>} : memref<8x2xf32, #tpu.memory_space<vmem>>, vector<8x2xf32>,
    return
  }
  func.func @transform_0(%arg0: i32) -> (i32, i32) {
    %c0_i32 = arith.constant 0 : i32
    %c0_i32_0 = arith.constant 0 : i32
    return %arg0, %c0_i32 : i32, i32
  }
  func.func @transform_1(%arg0: i32) -> (i32, i32) {
    %c0_i32 = arith.constant 0 : i32
    %c0_i32_0 = arith.constant 0 : i32
    %c0_i32_1 = arith.constant 0 : i32
    return %c0_i32, %c0_i32_0 : i32, i32
  }
  func.func @transform_2(%arg0: i32) -> (i32, i32) {
    %c0_i32 = arith.constant 0 : i32
    %c0_i32_0 = arith.constant 0 : i32
    %c0_i32_1 = arith.constant 0 : i32
    return %c0_i32, %c0_i32_0 : i32, i32
  }
  func.func @transform_3(%arg0: i32) -> (i32, i32) {
    %c0_i32 = arith.constant 0 : i32
    %c0_i32_0 = arith.constant 0 : i32
    %c0_i32_1 = arith.constant 0 : i32
    return %c0_i32, %c0_i32_0 : i32, i32
  }
  func.func @transform_4(%arg0: i32) -> (i32, i32) {
    %c0_i32 = arith.constant 0 : i32
    %c0_i32_0 = arith.constant 0 : i32
    %c0_i32_1 = arith.constant 0 : i32
    return %c0_i32, %c0_i32_0 : i32, i32
  }
  func.func @transform_5(%arg0: i32) -> (i32, i32) {
    %c0_i32 = arith.constant 0 : i32
    %c0_i32_0 = arith.constant 0 : i32
    return %arg0, %c0_i32 : i32, i32
  }
}

</mosaic_0001>

<llo_original>
// kernel: tpu_custom_call.1
$region0: #{tpu_custom_call.1}
  #allocation0 [shape = 'u32[]', space=smem, size = 0x4, offset = 0x4, fixed_abs, tag = 'smem constant byte address 0x4 - core index']
  #allocation1 [shape = 'u32[72,128]{1,0:T(1,128)}', space=vmem, size = 0x9000, scoped, tag = 'internal scratch']
  %s0 = inlined_call_operand.vmem [shape: f32[8,4], index: 0, kind: input, shape index: {}]
  %s1 = inlined_call_operand.vmem [shape: f32[4,50], index: 1, kind: input, shape index: {}]
  %s2 = inlined_call_operand.vmem [shape: f32[1,50], index: 2, kind: input, shape index: {}]
  %s3 = inlined_call_operand.vmem [shape: f32[50,2], index: 3, kind: input, shape index: {}]
  %s4 = inlined_call_operand.vmem [shape: f32[1,2], index: 4, kind: input, shape index: {}]
  %s5 = inlined_call_operand.vmem [shape: f32[8,2], index: 5, kind: output, shape index: {}]
  %s6 = sld [smem:[#allocation0]]
  $region30: #{tpu_custom_call.1} parent=0
    _
  %s8 = ssub.s32 1, %s6
  %s9 = scalar_select 0, %s8, %s6
  // Predicated region
  $region2: #{tpu_custom_call.1} parent=0 // pred_check
    _
  $region3: #{tpu_custom_call.1} parent=0 // pred_check_branch
    %11 = sbr.rel (0) target = $region5
  $region4: #{tpu_custom_call.1} parent=0 // pred_region
    _
  $region5: #{tpu_custom_call.1} parent=0 // pred_fallthru
    _
  // Predicated region
  $region6: #{tpu_custom_call.1} parent=0 // pred_check
    _
  $region7: #{tpu_custom_call.1} parent=0 // pred_check_branch
    %13 = sbr.rel (0) target = $region9
  $region8: #{tpu_custom_call.1} parent=0 // pred_region
    _
  $region9: #{tpu_custom_call.1} parent=0 // pred_fallthru
    _
  // Predicated region
  $region10: #{tpu_custom_call.1} parent=0 // pred_check
    _
  $region11: #{tpu_custom_call.1} parent=0 // pred_check_branch
    %15 = sbr.rel (0) target = $region13
  $region12: #{tpu_custom_call.1} parent=0 // pred_region
    _
  $region13: #{tpu_custom_call.1} parent=0 // pred_fallthru
    _
  // Predicated region
  $region14: #{tpu_custom_call.1} parent=0 // pred_check
    _
  $region15: #{tpu_custom_call.1} parent=0 // pred_check_branch
    %17 = sbr.rel (0) target = $region17
  $region16: #{tpu_custom_call.1} parent=0 // pred_region
    _
  $region17: #{tpu_custom_call.1} parent=0 // pred_fallthru
    _
  // Predicated region
  $region18: #{tpu_custom_call.1} parent=0 // pred_check
    _
  $region19: #{tpu_custom_call.1} parent=0 // pred_check_branch
    %19 = sbr.rel (0) target = $region21
  $region20: #{tpu_custom_call.1} parent=0 // pred_region
    _
  $region21: #{tpu_custom_call.1} parent=0 // pred_fallthru
    _
  %v20 = vld [vmem:[%s0] sm:$0xff]
  %v21 = vld [vmem:[%s1] sm:$0xf]
  %v22 = vld [vmem:[%s2] sm:$0x1]
  %v24 = vperm.slane %v22, 0
  %vm26 = vcmask 31744
  %v28 = vsel %vm26, %v20, 0
  %vm30 = vcmask 1043456
  %v32 = vsel %vm30, %v21, 0
  %34 = vmatpush.msra.mxu0 0.0
  %35 = vmatpush.msra.mxu0 0.0
  %36 = vmatpush.msra.mxu0 0.0
  %37 = vmatpush.msra.mxu0 0.0
  %38 = vmatpush.msra.mxu0 0.0
  %39 = vmatpush.msra.mxu0 0.0
  %40 = vmatpush.msra.mxu0 0.0
  %41 = vmatpush.msra.mxu0 0.0
  %42 = vmatpush.msra.mxu0 0.0
  %43 = vmatpush.msra.mxu0 0.0
  %44 = vmatpush.msra.mxu0 0.0
  %45 = vmatpush.msra.mxu0 0.0
  %46 = vmatpush.msra.mxu0 0.0
  %47 = vmatpush.msra.mxu0 0.0
  %48 = vmatpush.msra.mxu0 0.0
  %49 = vmatpush.msra.mxu0 %v32
  %50 = vmatmul.f32.gmra.mxu0 %v28
  %v51 = vpop.f32.mrf.mxu0
  %v52 = vadd.f32 %v24, %v51
  %53 = vdwg.mxu0
  %v54 = vmax.f32 %v52, 0.0
  %v55 = vld [vmem:[%s3] sm:$0xff]
  %v56 = vld [vmem:[%s3 + $0x8] sm:$0xff]
  %v57 = vld [vmem:[%s3 + $0x10] sm:$0xff]
  %v58 = vld [vmem:[%s3 + $0x18] sm:$0xff]
  %v59 = vld [vmem:[%s3 + $0x20] sm:$0xff]
  %v60 = vld [vmem:[%s3 + $0x28] sm:$0xff]
  %v61 = vld [vmem:[%s3 + $0x30] sm:$0x3]
  %v62 = vld [vmem:[%s4] sm:$0x1]
  %v64 = vperm.slane %v62, 0
  %vm66 = vcmask 408576
  %v68 = vsel %vm66, %v54, 0
  %vm70 = vcmask 1041408
  %v72 = vsel %vm70, %v61, 0
  %74 = vmatpush.msra.mxu0 0.0
  %75 = vmatpush.msra.mxu0 0.0
  %76 = vmatpush.msra.mxu0 0.0
  %77 = vmatpush.msra.mxu0 0.0
  %78 = vmatpush.msra.mxu0 0.0
  %79 = vmatpush.msra.mxu0 0.0
  %80 = vmatpush.msra.mxu0 0.0
  %81 = vmatpush.msra.mxu0 0.0
  %82 = vmatpush.msra.mxu0 0.0
  %83 = vmatpush.msra.mxu0 %v72
  %84 = vmatpush.msra.mxu0 %v60
  %85 = vmatpush.msra.mxu0 %v59
  %86 = vmatpush.msra.mxu0 %v58
  %87 = vmatpush.msra.mxu0 %v57
  %88 = vmatpush.msra.mxu0 %v56
  %89 = vmatpush.msra.mxu0 %v55
  %90 = vmatmul.f32.gmra.mxu0 %v68
  %v91 = vpop.f32.mrf.mxu0
  %v92 = vadd.f32 %v64, %v91
  %93 = vdwg.mxu0
  %vm94 = vcmask 15360
  %95 = vst.msk [vmem:[%s5] sm:$0xff] %vm94, %v92
  // Predicated region
  $region22: #{tpu_custom_call.1} parent=0 // pred_check
    _
  $region23: #{tpu_custom_call.1} parent=0 // pred_check_branch
    %97 = sbr.rel (0) target = $region25
  $region24: #{tpu_custom_call.1} parent=0 // pred_region
    _
  $region25: #{tpu_custom_call.1} parent=0 // pred_fallthru
    _
  // Predicated region
  $region26: #{tpu_custom_call.1} parent=0 // pred_check
    _
  $region27: #{tpu_custom_call.1} parent=0 // pred_check_branch
    %99 = sbr.rel (0) target = $region29
  $region28: #{tpu_custom_call.1} parent=0 // pred_region
    _
  $region29: #{tpu_custom_call.1} parent=0 // pred_fallthru
    _

</llo_original>
